<compile_context>
chip_gen: v6e
topology: v6e:2x2x1
jax: 0.10.0
libtpu: 0.0.40
codegen_flags: <defaults>
</compile_context>

<pallas_src>
import functools

import jax
import jax.numpy as jnp
import numpy as np
from jax import lax
from jax.experimental import pallas as pl
from jax.experimental.pallas import tpu as pltpu


def _fused_conv_gate_kernel(x_ref, w_ref, b_ref, o_ref, *, cout, wp, p_out):
    """One (batch, row-tile) grid step.

    x_ref : (Cin, (TH+3)*Wp)  bf16 -- padded rows of the tile, channel-major, flattened
    w_ref : (9, 2*Cout, Cin)  bf16 -- fused conv+attention weights, tap-major
    b_ref : (Cout, 1)         f32  -- conv bias
    o_ref : (Cout, TH*Wp)     f32  -- gated output, pixel-major lanes (lane dense)
    """
    xt = x_ref[...]                                       # (Cin, P_alloc)
    acc = jnp.zeros((2 * cout, p_out), dtype=jnp.float32)
    # 3x3 conv as 9 shifted matmuls: tap (di, dj) reads lane offset di*Wp + dj.
    for di in range(3):
        for dj in range(3):
            off = di * wp + dj
            xs = xt[:, off:off + p_out]                   # (Cin, P_out) static lane shift
            wt = w_ref[di * 3 + dj]                       # (2*Cout, Cin)
            acc = acc + jnp.dot(wt, xs, preferred_element_type=jnp.float32)
    feat = acc[:cout, :] + b_ref[...]                     # f32 epilogue
    mask = jax.nn.sigmoid(acc[cout:, :])
    o_ref[...] = (feat * mask).astype(o_ref.dtype)


def self_attention_block(x, w_conv, b_conv, w_attn, *, tile_rows=None, target_lanes=2048):
    """x: (B, Cin, H, W) NCHW.  w_*: (Cout, Cin, 3, 3) OIHW.  b_conv: (Cout,).
    Returns (B, Cout, H, W) NCHW (matches the PyTorch module)."""
    B, Cin, H, W = x.shape
    Cout = w_conv.shape[0]
    Hp, Wp = H + 2, W + 2

    # Reflect pad once (matches padding_mode='reflect'); stream it as bf16.
    x_pad = jnp.pad(x, ((0, 0), (0, 0), (1, 1), (1, 1)), mode="reflect")
    x_pad = x_pad.astype(jnp.bfloat16)

    # Row-tile size: keep the lane (pixel) axis large but the f32 accumulator modest.
    if tile_rows is None:
        tile_rows = max(1, min(H, target_lanes // Wp))
    TH = int(tile_rows)
    n_tiles = -(-H // TH)                 # ceil -> remainder tiles allowed
    p_out = TH * Wp
    rows_per_tile = TH + 3                # +2 conv halo, +1 slack for lane slices
    p_alloc = rows_per_tile * Wp

    # Gather halo'd row tiles (clipped at the bottom), channel-major, flattened.
    row_idx = jnp.minimum(
        jnp.arange(n_tiles, dtype=jnp.int32)[:, None] * TH
        + jnp.arange(rows_per_tile, dtype=jnp.int32)[None, :],
        Hp - 1)
    x_tiles = x_pad[:, :, row_idx, :]                     # (B, Cin, n_tiles, TH+3, Wp)
    x_tiles = x_tiles.transpose(0, 2, 1, 3, 4)            # (B, n_tiles, Cin, TH+3, Wp)
    x_tiles = x_tiles.reshape(B, n_tiles, Cin, p_alloc)

    # Fuse conv + attention weights into one (2*Cout)-wide matmul per tap.
    w_both = jnp.concatenate([w_conv, w_attn], axis=0)    # (2*Cout, Cin, 3, 3)
    w_fused = w_both.transpose(2, 3, 0, 1).reshape(9, 2 * Cout, Cin).astype(jnp.bfloat16)
    bias = b_conv.reshape(Cout, 1).astype(jnp.float32)

    kernel = functools.partial(_fused_conv_gate_kernel, cout=Cout, wp=Wp, p_out=p_out)

    out_tiles = pl.pallas_call(
        kernel,
        out_shape=jax.ShapeDtypeStruct((B, n_tiles, Cout, p_out), jnp.float32),
        grid_spec=pltpu.PrefetchScalarGridSpec(
            num_scalar_prefetch=0,
            grid=(B, n_tiles),
            in_specs=[
                pl.BlockSpec((None, None, Cin, p_alloc), lambda b, i: (b, i, 0, 0)),
                pl.BlockSpec((9, 2 * Cout, Cin), lambda b, i: (0, 0, 0)),   # resident
                pl.BlockSpec((Cout, 1), lambda b, i: (0, 0)),               # resident
            ],
            out_specs=pl.BlockSpec((None, None, Cout, p_out), lambda b, i: (b, i, 0, 0)),
        ),
        compiler_params=pltpu.CompilerParams(
            dimension_semantics=("parallel", "parallel"),
            vmem_limit_bytes=48 * 1024 * 1024,
        ),
    )(x_tiles, w_fused, bias)

    # (B, n_tiles, Cout, TH, Wp) -> NCHW, dropping the W halo and row remainder.
    # TODO(synk): downstream flair_unet blocks could consume the tiled layout
    # directly and skip this single transpose pass.
    out = out_tiles.reshape(B, n_tiles, Cout, TH, Wp)[:, :, :, :, :W]
    out = out.transpose(0, 2, 1, 3, 4).reshape(B, Cout, n_tiles * TH, W)
    return out[:, :, :H, :].astype(x.dtype)


def _reference(x, w_conv, b_conv, w_attn):
    """Pure-JAX (f32) reference matching the PyTorch forward."""
    xp = jnp.pad(x, ((0, 0), (0, 0), (1, 1), (1, 1)), mode="reflect")
    dn = ("NCHW", "OIHW", "NCHW")
    feat = lax.conv_general_dilated(xp, w_conv, (1, 1), "VALID", dimension_numbers=dn)
    feat = feat + b_conv[None, :, None, None]
    att = lax.conv_general_dilated(xp, w_attn, (1, 1), "VALID", dimension_numbers=dn)
    return feat * jax.nn.sigmoid(att)


if __name__ == "__main__":
    # Small shapes consistent with the module: in_size=4, out_size=8, 16x16 spatial.
    B, Cin, H, W = 2, 4, 16, 16
    Cout, ksize = 8, 3

    key = jax.random.PRNGKey(0)
    kx, kw, kb = jax.random.split(key, 3)

    x = jax.random.normal(kx, (B, Cin, H, W), dtype=jnp.float32)
    w_conv = 0.1 * jax.random.normal(kw, (Cout, Cin, ksize, ksize), dtype=jnp.float32)
    b_conv = 0.1 * jax.random.normal(kb, (Cout,), dtype=jnp.float32)
    w_attn = jnp.zeros((Cout, Cin, ksize, ksize), dtype=jnp.float32)  # zero-init, as in PyTorch

    fwd = jax.jit(self_attention_block)
    out = jax.block_until_ready(fwd(x, w_conv, b_conv, w_attn))

    ref = jax.block_until_ready(_reference(x, w_conv, b_conv, w_attn))
    assert out.shape == (B, Cout, H, W)
    # bf16 streaming operands with f32 accumulation -> loose-ish tolerance vs f32 reference.
    np.testing.assert_allclose(np.asarray(out), np.asarray(ref), rtol=2e-2, atol=2e-2)

    print("KERNEL_OK")
</pallas_src>

<mosaic_0001>
module attributes {stable_mosaic.version = 11 : i64} {
  func.func @_fused_conv_gate_kernel(%arg0: i32, %arg1: i32, %arg2: memref<1x1x4x342xbf16, #tpu.memory_space<vmem>>, %arg3: memref<9x16x4xbf16, #tpu.memory_space<vmem>>, %arg4: memref<8x1xf32, #tpu.memory_space<vmem>>, %arg5: memref<1x1x8x288xf32, #tpu.memory_space<vmem>>) attributes {dimension_semantics = [#tpu.dimension_semantics<parallel>, #tpu.dimension_semantics<parallel>], iteration_bounds = array<i64: 2, 1>, scalar_prefetch = 0 : i64, scratch_operands = 0 : i64, tpu.core_type = #tpu.core_type<tc>, window_params = [{transform_indices = @transform_0, window_bounds = array<i64: 1, 1, 4, 342>}, {pipeline_mode = #tpu.pipeline_mode<synchronous>, transform_indices = @transform_1, window_bounds = array<i64: 9, 16, 4>}, {pipeline_mode = #tpu.pipeline_mode<synchronous>, transform_indices = @transform_2, window_bounds = array<i64: 8, 1>}, {transform_indices = @transform_3, window_bounds = array<i64: 1, 1, 8, 288>}]} {
    %c0 = arith.constant 0 : index
    %c0_0 = arith.constant 0 : index
    %c0_1 = arith.constant 0 : index
    %c0_2 = arith.constant 0 : index
    %0 = vector.load %arg2[%c0, %c0_0, %c0_1, %c0_2] : memref<1x1x4x342xbf16, #tpu.memory_space<vmem>>, vector<1x1x4x342xbf16>
    %1 = vector.shape_cast %0 : vector<1x1x4x342xbf16> to vector<4x342xbf16>
    %cst = arith.constant 0.000000e+00 : f32
    %2 = vector.broadcast %cst : f32 to vector<16x288xf32>
    %3 = vector.extract_strided_slice %1 {offsets = [0, 0], sizes = [4, 288], strides = [1, 1]} : vector<4x342xbf16> to vector<4x288xbf16>
    %c0_3 = arith.constant 0 : index
    %c0_4 = arith.constant 0 : index
    %c0_5 = arith.constant 0 : index
    %4 = vector.load %arg3[%c0_3, %c0_4, %c0_5] : memref<9x16x4xbf16, #tpu.memory_space<vmem>>, vector<1x16x4xbf16>
    %5 = vector.shape_cast %4 : vector<1x16x4xbf16> to vector<16x4xbf16>
    %cst_6 = arith.constant dense<0.000000e+00> : vector<16x288xf32>
    %6 = tpu.matmul %5, %3, %cst_6 {dimension_numbers = #tpu.dot_dimension_numbers<[1], [0], [0], [1], [0, 0, 1, 1], [], []>} : vector<16x4xbf16>, vector<4x288xbf16>, vector<16x288xf32> -> vector<16x288xf32>
    %7 = arith.addf %2, %6 : vector<16x288xf32>
    %8 = vector.extract_strided_slice %1 {offsets = [0, 1], sizes = [4, 288], strides = [1, 1]} : vector<4x342xbf16> to vector<4x288xbf16>
    %c1 = arith.constant 1 : index
    %c0_7 = arith.constant 0 : index
    %c0_8 = arith.constant 0 : index
    %9 = vector.load %arg3[%c1, %c0_7, %c0_8] : memref<9x16x4xbf16, #tpu.memory_space<vmem>>, vector<1x16x4xbf16>
    %10 = vector.shape_cast %9 : vector<1x16x4xbf16> to vector<16x4xbf16>
    %cst_9 = arith.constant dense<0.000000e+00> : vector<16x288xf32>
    %11 = tpu.matmul %10, %8, %cst_9 {dimension_numbers = #tpu.dot_dimension_numbers<[1], [0], [0], [1], [0, 0, 1, 1], [], []>} : vector<16x4xbf16>, vector<4x288xbf16>, vector<16x288xf32> -> vector<16x288xf32>
    %12 = arith.addf %7, %11 : vector<16x288xf32>
    %13 = vector.extract_strided_slice %1 {offsets = [0, 2], sizes = [4, 288], strides = [1, 1]} : vector<4x342xbf16> to vector<4x288xbf16>
    %c2 = arith.constant 2 : index
    %c0_10 = arith.constant 0 : index
    %c0_11 = arith.constant 0 : index
    %14 = vector.load %arg3[%c2, %c0_10, %c0_11] : memref<9x16x4xbf16, #tpu.memory_space<vmem>>, vector<1x16x4xbf16>
    %15 = vector.shape_cast %14 : vector<1x16x4xbf16> to vector<16x4xbf16>
    %cst_12 = arith.constant dense<0.000000e+00> : vector<16x288xf32>
    %16 = tpu.matmul %15, %13, %cst_12 {dimension_numbers = #tpu.dot_dimension_numbers<[1], [0], [0], [1], [0, 0, 1, 1], [], []>} : vector<16x4xbf16>, vector<4x288xbf16>, vector<16x288xf32> -> vector<16x288xf32>
    %17 = arith.addf %12, %16 : vector<16x288xf32>
    %18 = vector.extract_strided_slice %1 {offsets = [0, 18], sizes = [4, 288], strides = [1, 1]} : vector<4x342xbf16> to vector<4x288xbf16>
    %c3 = arith.constant 3 : index
    %c0_13 = arith.constant 0 : index
    %c0_14 = arith.constant 0 : index
    %19 = vector.load %arg3[%c3, %c0_13, %c0_14] : memref<9x16x4xbf16, #tpu.memory_space<vmem>>, vector<1x16x4xbf16>
    %20 = vector.shape_cast %19 : vector<1x16x4xbf16> to vector<16x4xbf16>
    %cst_15 = arith.constant dense<0.000000e+00> : vector<16x288xf32>
    %21 = tpu.matmul %20, %18, %cst_15 {dimension_numbers = #tpu.dot_dimension_numbers<[1], [0], [0], [1], [0, 0, 1, 1], [], []>} : vector<16x4xbf16>, vector<4x288xbf16>, vector<16x288xf32> -> vector<16x288xf32>
    %22 = arith.addf %17, %21 : vector<16x288xf32>
    %23 = vector.extract_strided_slice %1 {offsets = [0, 19], sizes = [4, 288], strides = [1, 1]} : vector<4x342xbf16> to vector<4x288xbf16>
    %c4 = arith.constant 4 : index
    %c0_16 = arith.constant 0 : index
    %c0_17 = arith.constant 0 : index
    %24 = vector.load %arg3[%c4, %c0_16, %c0_17] : memref<9x16x4xbf16, #tpu.memory_space<vmem>>, vector<1x16x4xbf16>
    %25 = vector.shape_cast %24 : vector<1x16x4xbf16> to vector<16x4xbf16>
    %cst_18 = arith.constant dense<0.000000e+00> : vector<16x288xf32>
    %26 = tpu.matmul %25, %23, %cst_18 {dimension_numbers = #tpu.dot_dimension_numbers<[1], [0], [0], [1], [0, 0, 1, 1], [], []>} : vector<16x4xbf16>, vector<4x288xbf16>, vector<16x288xf32> -> vector<16x288xf32>
    %27 = arith.addf %22, %26 : vector<16x288xf32>
    %28 = vector.extract_strided_slice %1 {offsets = [0, 20], sizes = [4, 288], strides = [1, 1]} : vector<4x342xbf16> to vector<4x288xbf16>
    %c5 = arith.constant 5 : index
    %c0_19 = arith.constant 0 : index
    %c0_20 = arith.constant 0 : index
    %29 = vector.load %arg3[%c5, %c0_19, %c0_20] : memref<9x16x4xbf16, #tpu.memory_space<vmem>>, vector<1x16x4xbf16>
    %30 = vector.shape_cast %29 : vector<1x16x4xbf16> to vector<16x4xbf16>
    %cst_21 = arith.constant dense<0.000000e+00> : vector<16x288xf32>
    %31 = tpu.matmul %30, %28, %cst_21 {dimension_numbers = #tpu.dot_dimension_numbers<[1], [0], [0], [1], [0, 0, 1, 1], [], []>} : vector<16x4xbf16>, vector<4x288xbf16>, vector<16x288xf32> -> vector<16x288xf32>
    %32 = arith.addf %27, %31 : vector<16x288xf32>
    %33 = vector.extract_strided_slice %1 {offsets = [0, 36], sizes = [4, 288], strides = [1, 1]} : vector<4x342xbf16> to vector<4x288xbf16>
    %c6 = arith.constant 6 : index
    %c0_22 = arith.constant 0 : index
    %c0_23 = arith.constant 0 : index
    %34 = vector.load %arg3[%c6, %c0_22, %c0_23] : memref<9x16x4xbf16, #tpu.memory_space<vmem>>, vector<1x16x4xbf16>
    %35 = vector.shape_cast %34 : vector<1x16x4xbf16> to vector<16x4xbf16>
    %cst_24 = arith.constant dense<0.000000e+00> : vector<16x288xf32>
    %36 = tpu.matmul %35, %33, %cst_24 {dimension_numbers = #tpu.dot_dimension_numbers<[1], [0], [0], [1], [0, 0, 1, 1], [], []>} : vector<16x4xbf16>, vector<4x288xbf16>, vector<16x288xf32> -> vector<16x288xf32>
    %37 = arith.addf %32, %36 : vector<16x288xf32>
    %38 = vector.extract_strided_slice %1 {offsets = [0, 37], sizes = [4, 288], strides = [1, 1]} : vector<4x342xbf16> to vector<4x288xbf16>
    %c7 = arith.constant 7 : index
    %c0_25 = arith.constant 0 : index
    %c0_26 = arith.constant 0 : index
    %39 = vector.load %arg3[%c7, %c0_25, %c0_26] : memref<9x16x4xbf16, #tpu.memory_space<vmem>>, vector<1x16x4xbf16>
    %40 = vector.shape_cast %39 : vector<1x16x4xbf16> to vector<16x4xbf16>
    %cst_27 = arith.constant dense<0.000000e+00> : vector<16x288xf32>
    %41 = tpu.matmul %40, %38, %cst_27 {dimension_numbers = #tpu.dot_dimension_numbers<[1], [0], [0], [1], [0, 0, 1, 1], [], []>} : vector<16x4xbf16>, vector<4x288xbf16>, vector<16x288xf32> -> vector<16x288xf32>
    %42 = arith.addf %37, %41 : vector<16x288xf32>
    %43 = vector.extract_strided_slice %1 {offsets = [0, 38], sizes = [4, 288], strides = [1, 1]} : vector<4x342xbf16> to vector<4x288xbf16>
    %c8 = arith.constant 8 : index
    %c0_28 = arith.constant 0 : index
    %c0_29 = arith.constant 0 : index
    %44 = vector.load %arg3[%c8, %c0_28, %c0_29] : memref<9x16x4xbf16, #tpu.memory_space<vmem>>, vector<1x16x4xbf16>
    %45 = vector.shape_cast %44 : vector<1x16x4xbf16> to vector<16x4xbf16>
    %cst_30 = arith.constant dense<0.000000e+00> : vector<16x288xf32>
    %46 = tpu.matmul %45, %43, %cst_30 {dimension_numbers = #tpu.dot_dimension_numbers<[1], [0], [0], [1], [0, 0, 1, 1], [], []>} : vector<16x4xbf16>, vector<4x288xbf16>, vector<16x288xf32> -> vector<16x288xf32>
    %47 = arith.addf %42, %46 : vector<16x288xf32>
    %48 = vector.extract_strided_slice %47 {offsets = [0, 0], sizes = [8, 288], strides = [1, 1]} : vector<16x288xf32> to vector<8x288xf32>
    %c0_31 = arith.constant 0 : index
    %c0_32 = arith.constant 0 : index
    %49 = vector.load %arg4[%c0_31, %c0_32] : memref<8x1xf32, #tpu.memory_space<vmem>>, vector<8x1xf32>
    %50 = vector.broadcast %49 : vector<8x1xf32> to vector<8x288xf32>
    %51 = arith.addf %48, %50 : vector<8x288xf32>
    %52 = vector.extract_strided_slice %47 {offsets = [8, 0], sizes = [8, 288], strides = [1, 1]} : vector<16x288xf32> to vector<8x288xf32>
    %53 = arith.negf %52 : vector<8x288xf32>
    %54 = math.exp %53 : vector<8x288xf32>
    %cst_33 = arith.constant 1.000000e+00 : f32
    %55 = vector.broadcast %cst_33 : f32 to vector<8x288xf32>
    %56 = arith.addf %55, %54 : vector<8x288xf32>
    %57 = arith.divf %55, %56 : vector<8x288xf32>
    %58 = arith.mulf %51, %57 : vector<8x288xf32>
    %c0_34 = arith.constant 0 : index
    %c0_35 = arith.constant 0 : index
    %c0_36 = arith.constant 0 : index
    %c0_37 = arith.constant 0 : index
    %59 = vector.load %arg5[%c0_34, %c0_35, %c0_36, %c0_37] : memref<1x1x8x288xf32, #tpu.memory_space<vmem>>, vector<1x1x8x288xf32>
    %60 = vector.shape_cast %59 : vector<1x1x8x288xf32> to vector<8x288xf32>
    %61 = vector.shape_cast %58 : vector<8x288xf32> to vector<1x1x8x288xf32>
    tpu.vector_store %arg5[%c0_34, %c0_35, %c0_36, %c0_37], %61 {strides = array<i32>} : memref<1x1x8x288xf32, #tpu.memory_space<vmem>>, vector<1x1x8x288xf32>,
    return
  }
  func.func @transform_0(%arg0: i32, %arg1: i32) -> (i32, i32, i32, i32) {
    %c0_i32 = arith.constant 0 : i32
    %c0_i32_0 = arith.constant 0 : i32
    %c0_i32_1 = arith.constant 0 : i32
    return %arg0, %arg1, %c0_i32, %c0_i32_0 : i32, i32, i32, i32
  }
  func.func @transform_1(%arg0: i32, %arg1: i32) -> (i32, i32, i32) {
    %c0_i32 = arith.constant 0 : i32
    %c0_i32_0 = arith.constant 0 : i32
    %c0_i32_1 = arith.constant 0 : i32
    %c0_i32_2 = arith.constant 0 : i32
    return %c0_i32, %c0_i32_0, %c0_i32_1 : i32, i32, i32
  }
  func.func @transform_2(%arg0: i32, %arg1: i32) -> (i32, i32) {
    %c0_i32 = arith.constant 0 : i32
    %c0_i32_0 = arith.constant 0 : i32
    %c0_i32_1 = arith.constant 0 : i32
    return %c0_i32, %c0_i32_0 : i32, i32
  }
  func.func @transform_3(%arg0: i32, %arg1: i32) -> (i32, i32, i32, i32) {
    %c0_i32 = arith.constant 0 : i32
    %c0_i32_0 = arith.constant 0 : i32
    %c0_i32_1 = arith.constant 0 : i32
    return %arg0, %arg1, %c0_i32, %c0_i32_0 : i32, i32, i32, i32
  }
}

</mosaic_0001>

<llo_original>
// kernel: self_attention_block.1
$region0: #{self_attention_block.1}
  #allocation0 [shape = 'u32[]', space=smem, size = 0x4, offset = 0x4, fixed_abs, tag = 'smem constant byte address 0x4 - core index']
  #allocation1 [shape = 'u32[144,128]{1,0:T(1,128)}', space=vmem, size = 0x12000, scoped, tag = 'internal scratch']
  %s0 = inlined_call_operand.vmem [shape: bf16[2,1,4,342], index: 0, kind: input, shape index: {}]
  %s1 = inlined_call_operand.vmem [shape: bf16[9,16,4], index: 1, kind: input, shape index: {}]
  %s2 = inlined_call_operand.vmem [shape: f32[8,1], index: 2, kind: input, shape index: {}]
  %s3 = inlined_call_operand.vmem [shape: f32[2,1,8,288], index: 3, kind: output, shape index: {}]
  %s4 = sld [smem:[#allocation0]]
  $region45: #{self_attention_block.1} parent=0
    _
  %s6 = ssub.s32 1, %s4
  %s7 = scalar_select 0, %s6, %s4
  loop: start=0, step=1, limit=4
  $region2: #{self_attention_block.1} parent=0 // loop_pre_header
    _
  $region3: #{self_attention_block.1} parent=0 // loop_header
    %s9 = sphi 0, %s13
    %p10 = scmp.ge.s32.totalorder %s9, 4
    %s16 = sphi 0, %s28
    %s17 = sphi 0, %s24
    %s18 = sphi 0, %s16
    %s19 = sphi 0, %s17
    %s20 = sphi 0, %s18
    %s21 = sphi 0, %s19
    %s33 = sphi 0, %s35
    %s36 = sphi 0, %s33
    %s37 = sphi 0, %s36
    %s53 = sphi 0, %s37
    %s57 = sphi 0, %s57
    %s59 = sphi 0, %s57
    %s60 = sphi 0, %s59
    %s74 = sphi 0, %s60
    %s78 = sphi 0, %s78
    %s80 = sphi 0, %s78
    %s81 = sphi 0, %s80
    %s95 = sphi 0, %s81
    %s103 = sphi 0, %s105
    %s106 = sphi 0, %s103
    %s107 = sphi 0, %s106
    %s123 = sphi 0, %s107
  $region4: #{self_attention_block.1} parent=0 // loop_header_branch
    %12 = sbr.rel (%p10) target = $region8
  $region5: #{self_attention_block.1} parent=0 // loop_body
    %s14 = ssub.s32 %s9, 1
    %s15 = ssub.s32 %s9, 2
    %s22 = sadd.s32 1, %s17
    %p23 = scmp.ge.s32.totalorder %s22, 1
    %s24 = scalar_select %p23, 0, %s22
    %s25 = sadd.s32 1, %s16
    %s26 = scalar_select %p23, %s25, %s16
    %p27 = scmp.ge.s32.totalorder %s26, 2
    %s28 = scalar_select %p27, 0, %s26
    %s29 = ssub.s32 %s16, %s28
    %s30 = ssub.s32 %s17, %s24
    %s31 = sor.u32 %s29, %s30
    %p32 = scmp.eq.s32.totalorder %s31, 0
    %s34 = sadd.s32 %s33, 1
    %s35 = scalar_select %p32, %s33, %s34
    %p38 = pneg %p32
    %p39 = scmp.eq.s32.totalorder %s9, 1
    %p40 = por %p38, %p39
    %p41 = scmp.ne.s32.totalorder %s33, %s36
    %p42 = scmp.eq.s32.totalorder %s9, 0
    %p43 = por %p41, %p42
    %p44 = scmp.ne.s32.totalorder %s33, %s36
    %p45 = scmp.eq.s32.totalorder %s14, 1
    %p46 = por %p44, %p45
    %p47 = scmp.ne.s32.totalorder %s36, %s37
    %p48 = scmp.eq.s32.totalorder %s14, 0
    %p49 = por %p47, %p48
    %p50 = scmp.ne.s32.totalorder %s36, %s37
    %p51 = scmp.eq.s32.totalorder %s15, 1
    %p52 = por %p50, %p51
    %p54 = scmp.ne.s32.totalorder %s37, %s53
    %p55 = scmp.eq.s32.totalorder %s15, 0
    %p56 = por %p54, %p55
    %s58 = sadd.s32 %s57, 1
    %p61 = scmp.eq.s32.totalorder %s9, 1
    %p62 = scmp.ne.s32.totalorder %s57, %s59
    %p63 = scmp.eq.s32.totalorder %s9, 0
    %p64 = por %p62, %p63
    %p65 = scmp.ne.s32.totalorder %s57, %s59
    %p66 = scmp.eq.s32.totalorder %s14, 1
    %p67 = por %p65, %p66
    %p68 = scmp.ne.s32.totalorder %s59, %s60
    %p69 = scmp.eq.s32.totalorder %s14, 0
    %p70 = por %p68, %p69
    %p71 = scmp.ne.s32.totalorder %s59, %s60
    %p72 = scmp.eq.s32.totalorder %s15, 1
    %p73 = por %p71, %p72
    %p75 = scmp.ne.s32.totalorder %s60, %s74
    %p76 = scmp.eq.s32.totalorder %s15, 0
    %p77 = por %p75, %p76
    %s79 = sadd.s32 %s78, 1
    %p82 = scmp.eq.s32.totalorder %s9, 1
    %p83 = scmp.ne.s32.totalorder %s78, %s80
    %p84 = scmp.eq.s32.totalorder %s9, 0
    %p85 = por %p83, %p84
    %p86 = scmp.ne.s32.totalorder %s78, %s80
    %p87 = scmp.eq.s32.totalorder %s14, 1
    %p88 = por %p86, %p87
    %p89 = scmp.ne.s32.totalorder %s80, %s81
    %p90 = scmp.eq.s32.totalorder %s14, 0
    %p91 = por %p89, %p90
    %p92 = scmp.ne.s32.totalorder %s80, %s81
    %p93 = scmp.eq.s32.totalorder %s15, 1
    %p94 = por %p92, %p93
    %p96 = scmp.ne.s32.totalorder %s81, %s95
    %p97 = scmp.eq.s32.totalorder %s15, 0
    %p98 = por %p96, %p97
    %s99 = ssub.s32 %s16, %s28
    %s100 = ssub.s32 %s17, %s24
    %s101 = sor.u32 %s99, %s100
    %p102 = scmp.eq.s32.totalorder %s101, 0
    %s104 = sadd.s32 %s103, 1
    %s105 = scalar_select %p102, %s103, %s104
    %p108 = pneg %p102
    %p109 = scmp.eq.s32.totalorder %s9, 1
    %p110 = por %p108, %p109
    %p111 = scmp.ne.s32.totalorder %s103, %s106
    %p112 = scmp.eq.s32.totalorder %s9, 0
    %p113 = por %p111, %p112
    %p114 = scmp.ne.s32.totalorder %s103, %s106
    %p115 = scmp.eq.s32.totalorder %s14, 1
    %p116 = por %p114, %p115
    %p117 = scmp.ne.s32.totalorder %s106, %s107
    %p118 = scmp.eq.s32.totalorder %s14, 0
    %p119 = por %p117, %p118
    %p120 = scmp.ne.s32.totalorder %s106, %s107
    %p121 = scmp.eq.s32.totalorder %s15, 1
    %p122 = por %p120, %p121
    %p124 = scmp.ne.s32.totalorder %s107, %s123
    %p125 = scmp.eq.s32.totalorder %s15, 0
    %p126 = por %p124, %p125
    %p127 = scmp.le.s32.totalorder 1, %s9
    %p128 = scmp.lt.s32.totalorder %s9, 3
    %p129 = pnand %p127, %p128
    %p130 = pneg %p129
    // Predicated region
    $region9: #{self_attention_block.1} parent=5 // pred_check
      _
    $region10: #{self_attention_block.1} parent=5 // pred_check_branch
      %132 = sbr.rel (%p129) target = $region12
    $region11: #{self_attention_block.1} parent=5 // pred_region
      %s133 = ssub.s32 %s9, 1
      // Predicated region
      $region13: #{self_attention_block.1} parent=11 // pred_check
        %p134 = pneg %p70
      $region14: #{self_attention_block.1} parent=11 // pred_check_branch
        %136 = sbr.rel (%p134) target = $region16
      $region15: #{self_attention_block.1} parent=11 // pred_region
        _
      $region16: #{self_attention_block.1} parent=11 // pred_fallthru
        _
      // Predicated region
      $region17: #{self_attention_block.1} parent=11 // pred_check
        %p137 = pneg %p91
      $region18: #{self_attention_block.1} parent=11 // pred_check_branch
        %139 = sbr.rel (%p137) target = $region20
      $region19: #{self_attention_block.1} parent=11 // pred_region
        _
      $region20: #{self_attention_block.1} parent=11 // pred_fallthru
        _
    $region12: #{self_attention_block.1} parent=5 // pred_fallthru
      _
    %p140 = scmp.lt.s32.totalorder %s9, 2
    // Predicated region
    $region21: #{self_attention_block.1} parent=5 // pred_check
      %p141 = pneg %p140
    $region22: #{self_attention_block.1} parent=5 // pred_check_branch
      %143 = sbr.rel (%p141) target = $region24
    $region23: #{self_attention_block.1} parent=5 // pred_region
      // Predicated region
      $region25: #{self_attention_block.1} parent=23 // pred_check
        %p144 = pneg %p43
      $region26: #{self_attention_block.1} parent=23 // pred_check_branch
        %146 = sbr.rel (%p144) target = $region28
      $region27: #{self_attention_block.1} parent=23 // pred_region
        %p147 = scmp.lt.s32.totalorder %s16, 1
        %s148 = scalar_select %p147, %s16, 1
        %p149 = scmp.lt.s32.totalorder %s17, 0
        %s150 = scalar_select %p149, %s17, 0
        %s151 = smul.addr %s150, 3
        %s152 = smul.addr %s148, 3
        %s153 = sadd.s32 %s151, %s152
        %s154 = smul.addr %s153, 2
        %s155 = scalar_lea.vmem %s0, %s154
      $region28: #{self_attention_block.1} parent=23 // pred_fallthru
        _
    $region24: #{self_attention_block.1} parent=5 // pred_fallthru
      _
    %p156 = scmp.le.s32.totalorder 1, %s9
    %p157 = scmp.lt.s32.totalorder %s9, 3
    %p158 = pnand %p156, %p157
    %p159 = pneg %p158
    // Predicated region
    $region29: #{self_attention_block.1} parent=5 // pred_check
      _
    $region30: #{self_attention_block.1} parent=5 // pred_check_branch
      %161 = sbr.rel (%p158) target = $region32
    $region31: #{self_attention_block.1} parent=5 // pred_region
      %s162 = ssub.s32 %s9, 1
      %p163 = scmp.lt.s32.totalorder %s18, 1
      %s164 = scalar_select %p163, %s18, 1
      %p165 = scmp.lt.s32.totalorder %s19, 0
      %s166 = scalar_select %p165, %s19, 0
      %s167 = smul.addr %s166, 3
      %s168 = smul.addr %s164, 3
      %s169 = sadd.s32 %s167, %s168
      %s170 = smul.addr %s169, 2
      %s171 = scalar_lea.vmem %s0, %s170
      %p172 = pneg %p49
      %p173 = pneg %p46
      %p174 = pneg %p70
      %p175 = pneg %p67
      %p176 = pneg %p91
      %p177 = pneg %p88
      %p178 = pneg %p119
      %p179 = pneg %p116
      %p180 = scmp.lt.s32.totalorder %s18, 1
      %s181 = scalar_select %p180, %s18, 1
      %p182 = scmp.lt.s32.totalorder %s19, 0
      %s183 = scalar_select %p182, %s19, 0
      %s184 = smul.addr %s183, 3
      %s185 = smul.addr %s181, 3
      %s186 = sadd.s32 %s184, %s185
      %s187 = smul.addr %s186, 8
      %s188 = scalar_lea.vmem %s3, %s187
      %p189 = scmp.lt.s32.totalorder %s18, 1
      %s190 = scalar_select %p189, %s18, 1
      %p191 = scmp.lt.s32.totalorder %s19, 0
      %s192 = scalar_select %p191, %s19, 0
      %s193 = smul.addr %s192, 3
      %s194 = smul.addr %s190, 3
      %s195 = sadd.s32 %s193, %s194
      %s196 = smul.addr %s195, 2
      %s197 = scalar_lea.vmem %s0, %s196
      %p198 = scmp.lt.s32.totalorder %s18, 1
      %s199 = scalar_select %p198, %s18, 1
      %p200 = scmp.lt.s32.totalorder %s19, 0
      %s201 = scalar_select %p200, %s19, 0
      %s202 = smul.addr %s201, 3
      %s203 = smul.addr %s199, 3
      %s204 = sadd.s32 %s202, %s203
      %s205 = smul.addr %s204, 8
      %s206 = scalar_lea.vmem %s3, %s205
      %v208 = vld [vmem:[%s197] sm:$0x3f]
      %v209 = vld [vmem:[%s1] sm:$0xf]
      %v210 = vld [vmem:[%s1 + $0x4] sm:$0xf]
      %s211 = scalar_lea.vmem %s1, 8
      %v212 = vld [vmem:[%s211] sm:$0xf]
      %v213 = vld [vmem:[%s211 + $0x4] sm:$0xf]
      %v216 = vunpack.c.l.b16 %v212
      %v217 = vunpack.c.l.b16 %v213
      %v218 = vpack.c.b16 %v217, %v216
      %v220 = vcombine.high %v208, %v208
      %v222 = vunpack.c.l.s4 1983009808
      %v223 = vunpack.c.0.s8 %v222
      %v224 = vlaneseq
      %v225 = vshrl.u32 %v224, 7
      %v226 = vsub.s32 %v223, %v225
      %v227 = vrot.slane %v208, %v226
      %v229 = vunpack.c.l.s4 1983009808
      %v230 = vunpack.c.0.s8 %v229
      %v231 = vlaneseq
      %v232 = vshrl.u32 %v231, 7
      %v233 = vsub.s32 %v230, %v232
      %v234 = vrot.slane %v220, %v233
      %v235 = vcombine.high %v227, %v227
      %236 = vrot.lane.b32.xlu0 %v227, 127
      %v237 = vpop.permute.xlu0 %236
      %238 = vrot.lane.b32.xlu0 %v235, 127
      %v239 = vpop.permute.xlu0 %238
      %240 = vrot.lane.b32.xlu0 %v234, 127
      %v241 = vpop.permute.xlu0 %240
      %vm242 = vcmask 1039360
      %v243 = vsel %vm242, %v237, %v239
      %v244 = vsel %vm242, %v239, %v241
      %vm245 = vcmask 31744
      %v247 = vsel %vm245, %v218, 0
      %vm249 = vcmask 1041408
      %v251 = vsel %vm249, %v243, 0
      %v254 = vsel %vm249, %v244, 0
      %v257 = vsel %vm249, %v241, 0
      %259 = vmatprep.subr.bf16.mxu0 0
      %260 = vmatpush1.bf16.msra.mxu0 0
      %261 = vmatprep.subr.bf16.mxu0 0
      %262 = vmatpush1.bf16.msra.mxu0 0
      %263 = vmatprep.subr.bf16.mxu0 0
      %264 = vmatpush1.bf16.msra.mxu0 0
      %265 = vmatprep.subr.bf16.mxu0 0
      %266 = vmatpush1.bf16.msra.mxu0 0
      %267 = vmatprep.subr.bf16.mxu0 0
      %268 = vmatpush1.bf16.msra.mxu0 0
      %269 = vmatprep.subr.bf16.mxu0 0
      %270 = vmatpush1.bf16.msra.mxu0 0
      %271 = vmatprep.subr.bf16.mxu0 0
      %272 = vmatpush1.bf16.msra.mxu0 0
      %273 = vmatprep.subr.bf16.mxu0 %v254
      %274 = vmatpush1.bf16.msra.mxu0 %v251
      %275 = vmatprep.subr.bf16.mxu0 0
      %276 = vmatpush2.bf16.msra.mxu0 0
      %277 = vmatprep.subr.bf16.mxu0 0
      %278 = vmatpush2.bf16.msra.mxu0 0
      %279 = vmatprep.subr.bf16.mxu0 0
      %280 = vmatpush2.bf16.msra.mxu0 0
      %281 = vmatprep.subr.bf16.mxu0 0
      %282 = vmatpush2.bf16.msra.mxu0 0
      %283 = vmatprep.subr.bf16.mxu0 0
      %284 = vmatpush2.bf16.msra.mxu0 0
      %285 = vmatprep.subr.bf16.mxu0 0
      %286 = vmatpush2.bf16.msra.mxu0 0
      %287 = vmatprep.subr.bf16.mxu0 0
      %288 = vmatpush2.bf16.msra.mxu0 0
      %289 = vmatprep.subr.bf16.mxu0 0
      %290 = vmatpush2.bf16.msra.mxu0 0
      %291 = vmatprep.mubr.bf16.mxu0 0
      %292 = vmatmul.mubr.bf16.gmra.mxu0 %v247
      %v293 = vpop.f32.mrf.mxu0
      %v294 = vadd.f32 0.0, %v293
      %v295 = vpop.f32.mrf.mxu0
      %v296 = vadd.f32 0.0, %v295
      %v297 = vpop.f32.mrf.mxu0
      %v298 = vadd.f32 0.0, %v297
      %v299 = vpop.f32.mrf.mxu0
      %v300 = vadd.f32 0.0, %v299
      %301 = vdwg.mxu0
      %302 = vmatprep.subr.bf16.mxu0 0
      %303 = vmatpush1.bf16.msra.mxu0 0
      %304 = vmatprep.subr.bf16.mxu0 0
      %305 = vmatpush1.bf16.msra.mxu0 0
      %306 = vmatprep.subr.bf16.mxu0 0
      %307 = vmatpush1.bf16.msra.mxu0 0
      %308 = vmatprep.subr.bf16.mxu0 0
      %309 = vmatpush1.bf16.msra.mxu0 0
      %310 = vmatprep.subr.bf16.mxu0 0
      %311 = vmatpush1.bf16.msra.mxu0 0
      %312 = vmatprep.subr.bf16.mxu0 0
      %313 = vmatpush1.bf16.msra.mxu0 0
      %314 = vmatprep.subr.bf16.mxu0 0
      %315 = vmatpush1.bf16.msra.mxu0 0
      %316 = vmatprep.subr.bf16.mxu0 0
      %317 = vmatpush1.bf16.msra.mxu0 %v257
      %318 = vmatprep.subr.bf16.mxu0 0
      %319 = vmatpush2.bf16.msra.mxu0 0
      %320 = vmatprep.subr.bf16.mxu0 0
      %321 = vmatpush2.bf16.msra.mxu0 0
      %322 = vmatprep.subr.bf16.mxu0 0
      %323 = vmatpush2.bf16.msra.mxu0 0
      %324 = vmatprep.subr.bf16.mxu0 0
      %325 = vmatpush2.bf16.msra.mxu0 0
      %326 = vmatprep.subr.bf16.mxu0 0
      %327 = vmatpush2.bf16.msra.mxu0 0
      %328 = vmatprep.subr.bf16.mxu0 0
      %329 = vmatpush2.bf16.msra.mxu0 0
      %330 = vmatprep.subr.bf16.mxu0 0
      %331 = vmatpush2.bf16.msra.mxu0 0
      %332 = vmatprep.subr.bf16.mxu0 0
      %333 = vmatpush2.bf16.msra.mxu0 0
      %334 = vmatprep.mubr.bf16.mxu0 0
      %335 = vmatmul.mubr.bf16.gmra.mxu0 %v247
      %v336 = vpop.f32.mrf.mxu0
      %v337 = vadd.f32 0.0, %v336
      %v338 = vpop.f32.mrf.mxu0
      %v339 = vpop.f32.mrf.mxu0
      %v340 = vadd.f32 0.0, %v339
      %v341 = vpop.f32.mrf.mxu0
      %342 = vdwg.mxu0
      %v345 = vunpack.c.l.b16 %v209
      %v346 = vunpack.c.l.b16 %v210
      %v347 = vpack.c.b16 %v346, %v345
      %v349 = vsel %vm245, %v347, 0
      %v352 = vsel %vm249, %v227, 0
      %v355 = vsel %vm249, %v235, 0
      %v358 = vsel %vm249, %v234, 0
      %360 = vmatprep.subr.bf16.mxu0 0
      %361 = vmatpush1.bf16.msra.mxu0 0
      %362 = vmatprep.subr.bf16.mxu0 0
      %363 = vmatpush1.bf16.msra.mxu0 0
      %364 = vmatprep.subr.bf16.mxu0 0
      %365 = vmatpush1.bf16.msra.mxu0 0
      %366 = vmatprep.subr.bf16.mxu0 0
      %367 = vmatpush1.bf16.msra.mxu0 0
      %368 = vmatprep.subr.bf16.mxu0 0
      %369 = vmatpush1.bf16.msra.mxu0 0
      %370 = vmatprep.subr.bf16.mxu0 0
      %371 = vmatpush1.bf16.msra.mxu0 0
      %372 = vmatprep.subr.bf16.mxu0 0
      %373 = vmatpush1.bf16.msra.mxu0 0
      %374 = vmatprep.subr.bf16.mxu0 %v355
      %375 = vmatpush1.bf16.msra.mxu0 %v352
      %376 = vmatprep.subr.bf16.mxu0 0
      %377 = vmatpush2.bf16.msra.mxu0 0
      %378 = vmatprep.subr.bf16.mxu0 0
      %379 = vmatpush2.bf16.msra.mxu0 0
      %380 = vmatprep.subr.bf16.mxu0 0
      %381 = vmatpush2.bf16.msra.mxu0 0
      %382 = vmatprep.subr.bf16.mxu0 0
      %383 = vmatpush2.bf16.msra.mxu0 0
      %384 = vmatprep.subr.bf16.mxu0 0
      %385 = vmatpush2.bf16.msra.mxu0 0
      %386 = vmatprep.subr.bf16.mxu0 0
      %387 = vmatpush2.bf16.msra.mxu0 0
      %388 = vmatprep.subr.bf16.mxu0 0
      %389 = vmatpush2.bf16.msra.mxu0 0
      %390 = vmatprep.subr.bf16.mxu0 0
      %391 = vmatpush2.bf16.msra.mxu0 0
      %392 = vmatprep.mubr.bf16.mxu0 0
      %393 = vmatmul.mubr.bf16.gmra.mxu0 %v349
      %v394 = vpop.f32.mrf.mxu0
      %v395 = vadd.f32 %v294, %v394
      %v396 = vpop.f32.mrf.mxu0
      %v397 = vadd.f32 %v296, %v396
      %v398 = vpop.f32.mrf.mxu0
      %v399 = vadd.f32 %v298, %v398
      %v400 = vpop.f32.mrf.mxu0
      %v401 = vadd.f32 %v300, %v400
      %402 = vdwg.mxu0
      %403 = vmatprep.subr.bf16.mxu0 0
      %404 = vmatpush1.bf16.msra.mxu0 0
      %405 = vmatprep.subr.bf16.mxu0 0
      %406 = vmatpush1.bf16.msra.mxu0 0
      %407 = vmatprep.subr.bf16.mxu0 0
      %408 = vmatpush1.bf16.msra.mxu0 0
      %409 = vmatprep.subr.bf16.mxu0 0
      %410 = vmatpush1.bf16.msra.mxu0 0
      %411 = vmatprep.subr.bf16.mxu0 0
      %412 = vmatpush1.bf16.msra.mxu0 0
      %413 = vmatprep.subr.bf16.mxu0 0
      %414 = vmatpush1.bf16.msra.mxu0 0
      %415 = vmatprep.subr.bf16.mxu0 0
      %416 = vmatpush1.bf16.msra.mxu0 0
      %417 = vmatprep.subr.bf16.mxu0 0
      %418 = vmatpush1.bf16.msra.mxu0 %v358
      %419 = vmatprep.subr.bf16.mxu0 0
      %420 = vmatpush2.bf16.msra.mxu0 0
      %421 = vmatprep.subr.bf16.mxu0 0
      %422 = vmatpush2.bf16.msra.mxu0 0
      %423 = vmatprep.subr.bf16.mxu0 0
      %424 = vmatpush2.bf16.msra.mxu0 0
      %425 = vmatprep.subr.bf16.mxu0 0
      %426 = vmatpush2.bf16.msra.mxu0 0
      %427 = vmatprep.subr.bf16.mxu0 0
      %428 = vmatpush2.bf16.msra.mxu0 0
      %429 = vmatprep.subr.bf16.mxu0 0
      %430 = vmatpush2.bf16.msra.mxu0 0
      %431 = vmatprep.subr.bf16.mxu0 0
      %432 = vmatpush2.bf16.msra.mxu0 0
      %433 = vmatprep.subr.bf16.mxu0 0
      %434 = vmatpush2.bf16.msra.mxu0 0
      %435 = vmatprep.mubr.bf16.mxu0 0
      %436 = vmatmul.mubr.bf16.gmra.mxu0 %v349
      %v437 = vpop.f32.mrf.mxu0
      %v438 = vadd.f32 %v337, %v437
      %v439 = vpop.f32.mrf.mxu0
      %v440 = vpop.f32.mrf.mxu0
      %v441 = vadd.f32 %v340, %v440
      %v442 = vpop.f32.mrf.mxu0
      %443 = vdwg.mxu0
      %s444 = scalar_lea.vmem %s1, 16
      %v445 = vld [vmem:[%s444] sm:$0xf]
      %v446 = vld [vmem:[%s444 + $0x4] sm:$0xf]
      %v449 = vunpack.c.l.b16 %v445
      %v450 = vunpack.c.l.b16 %v446
      %v451 = vpack.c.b16 %v450, %v449
      %452 = vrot.lane.b32.xlu0 %v227, 126
      %v453 = vpop.permute.xlu0 %452
      %454 = vrot.lane.b32.xlu0 %v235, 126
      %v455 = vpop.permute.xlu0 %454
      %456 = vrot.lane.b32.xlu0 %v234, 126
      %v457 = vpop.permute.xlu0 %456
      %vm458 = vcmask 1031168
      %v459 = vsel %vm458, %v453, %v455
      %v460 = vsel %vm458, %v455, %v457
      %v462 = vsel %vm245, %v451, 0
      %v465 = vsel %vm249, %v459, 0
      %v468 = vsel %vm249, %v460, 0
      %v471 = vsel %vm249, %v457, 0
      %473 = vmatprep.subr.bf16.mxu0 0
      %474 = vmatpush1.bf16.msra.mxu0 0
      %475 = vmatprep.subr.bf16.mxu0 0
      %476 = vmatpush1.bf16.msra.mxu0 0
      %477 = vmatprep.subr.bf16.mxu0 0
      %478 = vmatpush1.bf16.msra.mxu0 0
      %479 = vmatprep.subr.bf16.mxu0 0
      %480 = vmatpush1.bf16.msra.mxu0 0
      %481 = vmatprep.subr.bf16.mxu0 0
      %482 = vmatpush1.bf16.msra.mxu0 0
      %483 = vmatprep.subr.bf16.mxu0 0
      %484 = vmatpush1.bf16.msra.mxu0 0
      %485 = vmatprep.subr.bf16.mxu0 0
      %486 = vmatpush1.bf16.msra.mxu0 0
      %487 = vmatprep.subr.bf16.mxu0 %v468
      %488 = vmatpush1.bf16.msra.mxu0 %v465
      %489 = vmatprep.subr.bf16.mxu0 0
      %490 = vmatpush2.bf16.msra.mxu0 0
      %491 = vmatprep.subr.bf16.mxu0 0
      %492 = vmatpush2.bf16.msra.mxu0 0
      %493 = vmatprep.subr.bf16.mxu0 0
      %494 = vmatpush2.bf16.msra.mxu0 0
      %495 = vmatprep.subr.bf16.mxu0 0
      %496 = vmatpush2.bf16.msra.mxu0 0
      %497 = vmatprep.subr.bf16.mxu0 0
      %498 = vmatpush2.bf16.msra.mxu0 0
      %499 = vmatprep.subr.bf16.mxu0 0
      %500 = vmatpush2.bf16.msra.mxu0 0
      %501 = vmatprep.subr.bf16.mxu0 0
      %502 = vmatpush2.bf16.msra.mxu0 0
      %503 = vmatprep.subr.bf16.mxu0 0
      %504 = vmatpush2.bf16.msra.mxu0 0
      %505 = vmatprep.mubr.bf16.mxu0 0
      %506 = vmatmul.mubr.bf16.gmra.mxu0 %v462
      %v507 = vpop.f32.mrf.mxu0
      %v508 = vadd.f32 0.0, %v507
      %v509 = vpop.f32.mrf.mxu0
      %v510 = vadd.f32 0.0, %v509
      %v511 = vpop.f32.mrf.mxu0
      %v512 = vadd.f32 0.0, %v511
      %v513 = vpop.f32.mrf.mxu0
      %v514 = vadd.f32 0.0, %v513
      %515 = vdwg.mxu0
      %516 = vmatprep.subr.bf16.mxu0 0
      %517 = vmatpush1.bf16.msra.mxu0 0
      %518 = vmatprep.subr.bf16.mxu0 0
      %519 = vmatpush1.bf16.msra.mxu0 0
      %520 = vmatprep.subr.bf16.mxu0 0
      %521 = vmatpush1.bf16.msra.mxu0 0
      %522 = vmatprep.subr.bf16.mxu0 0
      %523 = vmatpush1.bf16.msra.mxu0 0
      %524 = vmatprep.subr.bf16.mxu0 0
      %525 = vmatpush1.bf16.msra.mxu0 0
      %526 = vmatprep.subr.bf16.mxu0 0
      %527 = vmatpush1.bf16.msra.mxu0 0
      %528 = vmatprep.subr.bf16.mxu0 0
      %529 = vmatpush1.bf16.msra.mxu0 0
      %530 = vmatprep.subr.bf16.mxu0 0
      %531 = vmatpush1.bf16.msra.mxu0 %v471
      %532 = vmatprep.subr.bf16.mxu0 0
      %533 = vmatpush2.bf16.msra.mxu0 0
      %534 = vmatprep.subr.bf16.mxu0 0
      %535 = vmatpush2.bf16.msra.mxu0 0
      %536 = vmatprep.subr.bf16.mxu0 0
      %537 = vmatpush2.bf16.msra.mxu0 0
      %538 = vmatprep.subr.bf16.mxu0 0
      %539 = vmatpush2.bf16.msra.mxu0 0
      %540 = vmatprep.subr.bf16.mxu0 0
      %541 = vmatpush2.bf16.msra.mxu0 0
      %542 = vmatprep.subr.bf16.mxu0 0
      %543 = vmatpush2.bf16.msra.mxu0 0
      %544 = vmatprep.subr.bf16.mxu0 0
      %545 = vmatpush2.bf16.msra.mxu0 0
      %546 = vmatprep.subr.bf16.mxu0 0
      %547 = vmatpush2.bf16.msra.mxu0 0
      %548 = vmatprep.mubr.bf16.mxu0 0
      %549 = vmatmul.mubr.bf16.gmra.mxu0 %v462
      %v550 = vpop.f32.mrf.mxu0
      %v551 = vadd.f32 0.0, %v550
      %v552 = vpop.f32.mrf.mxu0
      %v553 = vpop.f32.mrf.mxu0
      %v554 = vadd.f32 0.0, %v553
      %v555 = vpop.f32.mrf.mxu0
      %556 = vdwg.mxu0
      %v557 = vadd.f32 %v395, %v508
      %v558 = vadd.f32 %v397, %v510
      %v559 = vadd.f32 %v438, %v551
      %v560 = vadd.f32 %v399, %v512
      %v561 = vadd.f32 %v401, %v514
      %v562 = vadd.f32 %v441, %v554
      %s563 = scalar_lea.vmem %s1, 24
      %v564 = vld [vmem:[%s563] sm:$0xf]
      %v565 = vld [vmem:[%s563 + $0x4] sm:$0xf]
      %v568 = vunpack.c.l.b16 %v564
      %v569 = vunpack.c.l.b16 %v565
      %v570 = vpack.c.b16 %v569, %v568
      %571 = vrot.lane.b32.xlu0 %v227, 110
      %v572 = vpop.permute.xlu0 %571
      %573 = vrot.lane.b32.xlu0 %v235, 110
      %v574 = vpop.permute.xlu0 %573
      %575 = vrot.lane.b32.xlu0 %v234, 110
      %v576 = vpop.permute.xlu0 %575
      %vm577 = vcmask 900096
      %v578 = vsel %vm577, %v572, %v574
      %v579 = vsel %vm577, %v574, %v576
      %v581 = vsel %vm245, %v570, 0
      %v584 = vsel %vm249, %v578, 0
      %v587 = vsel %vm249, %v579, 0
      %v590 = vsel %vm249, %v576, 0
      %592 = vmatprep.subr.bf16.mxu0 0
      %593 = vmatpush1.bf16.msra.mxu0 0
      %594 = vmatprep.subr.bf16.mxu0 0
      %595 = vmatpush1.bf16.msra.mxu0 0
      %596 = vmatprep.subr.bf16.mxu0 0
      %597 = vmatpush1.bf16.msra.mxu0 0
      %598 = vmatprep.subr.bf16.mxu0 0
      %599 = vmatpush1.bf16.msra.mxu0 0
      %600 = vmatprep.subr.bf16.mxu0 0
      %601 = vmatpush1.bf16.msra.mxu0 0
      %602 = vmatprep.subr.bf16.mxu0 0
      %603 = vmatpush1.bf16.msra.mxu0 0
      %604 = vmatprep.subr.bf16.mxu0 0
      %605 = vmatpush1.bf16.msra.mxu0 0
      %606 = vmatprep.subr.bf16.mxu0 %v587
      %607 = vmatpush1.bf16.msra.mxu0 %v584
      %608 = vmatprep.subr.bf16.mxu0 0
      %609 = vmatpush2.bf16.msra.mxu0 0
      %610 = vmatprep.subr.bf16.mxu0 0
      %611 = vmatpush2.bf16.msra.mxu0 0
      %612 = vmatprep.subr.bf16.mxu0 0
      %613 = vmatpush2.bf16.msra.mxu0 0
      %614 = vmatprep.subr.bf16.mxu0 0
      %615 = vmatpush2.bf16.msra.mxu0 0
      %616 = vmatprep.subr.bf16.mxu0 0
      %617 = vmatpush2.bf16.msra.mxu0 0
      %618 = vmatprep.subr.bf16.mxu0 0
      %619 = vmatpush2.bf16.msra.mxu0 0
      %620 = vmatprep.subr.bf16.mxu0 0
      %621 = vmatpush2.bf16.msra.mxu0 0
      %622 = vmatprep.subr.bf16.mxu0 0
      %623 = vmatpush2.bf16.msra.mxu0 0
      %624 = vmatprep.mubr.bf16.mxu0 0
      %625 = vmatmul.mubr.bf16.gmra.mxu0 %v581
      %v626 = vpop.f32.mrf.mxu0
      %v627 = vadd.f32 0.0, %v626
      %v628 = vpop.f32.mrf.mxu0
      %v629 = vadd.f32 0.0, %v628
      %v630 = vpop.f32.mrf.mxu0
      %v631 = vadd.f32 0.0, %v630
      %v632 = vpop.f32.mrf.mxu0
      %v633 = vadd.f32 0.0, %v632
      %634 = vdwg.mxu0
      %635 = vmatprep.subr.bf16.mxu0 0
      %636 = vmatpush1.bf16.msra.mxu0 0
      %637 = vmatprep.subr.bf16.mxu0 0
      %638 = vmatpush1.bf16.msra.mxu0 0
      %639 = vmatprep.subr.bf16.mxu0 0
      %640 = vmatpush1.bf16.msra.mxu0 0
      %641 = vmatprep.subr.bf16.mxu0 0
      %642 = vmatpush1.bf16.msra.mxu0 0
      %643 = vmatprep.subr.bf16.mxu0 0
      %644 = vmatpush1.bf16.msra.mxu0 0
      %645 = vmatprep.subr.bf16.mxu0 0
      %646 = vmatpush1.bf16.msra.mxu0 0
      %647 = vmatprep.subr.bf16.mxu0 0
      %648 = vmatpush1.bf16.msra.mxu0 0
      %649 = vmatprep.subr.bf16.mxu0 0
      %650 = vmatpush1.bf16.msra.mxu0 %v590
      %651 = vmatprep.subr.bf16.mxu0 0
      %652 = vmatpush2.bf16.msra.mxu0 0
      %653 = vmatprep.subr.bf16.mxu0 0
      %654 = vmatpush2.bf16.msra.mxu0 0
      %655 = vmatprep.subr.bf16.mxu0 0
      %656 = vmatpush2.bf16.msra.mxu0 0
      %657 = vmatprep.subr.bf16.mxu0 0
      %658 = vmatpush2.bf16.msra.mxu0 0
      %659 = vmatprep.subr.bf16.mxu0 0
      %660 = vmatpush2.bf16.msra.mxu0 0
      %661 = vmatprep.subr.bf16.mxu0 0
      %662 = vmatpush2.bf16.msra.mxu0 0
      %663 = vmatprep.subr.bf16.mxu0 0
      %664 = vmatpush2.bf16.msra.mxu0 0
      %665 = vmatprep.subr.bf16.mxu0 0
      %666 = vmatpush2.bf16.msra.mxu0 0
      %667 = vmatprep.mubr.bf16.mxu0 0
      %668 = vmatmul.mubr.bf16.gmra.mxu0 %v581
      %v669 = vpop.f32.mrf.mxu0
      %v670 = vadd.f32 0.0, %v669
      %v671 = vpop.f32.mrf.mxu0
      %v672 = vpop.f32.mrf.mxu0
      %v673 = vadd.f32 0.0, %v672
      %v674 = vpop.f32.mrf.mxu0
      %675 = vdwg.mxu0
      %v676 = vadd.f32 %v557, %v627
      %v677 = vadd.f32 %v558, %v629
      %v678 = vadd.f32 %v559, %v670
      %v679 = vadd.f32 %v560, %v631
      %v680 = vadd.f32 %v561, %v633
      %v681 = vadd.f32 %v562, %v673
      %s682 = scalar_lea.vmem %s1, 32
      %v683 = vld [vmem:[%s682] sm:$0xf]
      %v684 = vld [vmem:[%s682 + $0x4] sm:$0xf]
      %v687 = vunpack.c.l.b16 %v683
      %v688 = vunpack.c.l.b16 %v684
      %v689 = vpack.c.b16 %v688, %v687
      %690 = vrot.lane.b32.xlu0 %v227, 109
      %v691 = vpop.permute.xlu0 %690
      %692 = vrot.lane.b32.xlu0 %v235, 109
      %v693 = vpop.permute.xlu0 %692
      %694 = vrot.lane.b32.xlu0 %v234, 109
      %v695 = vpop.permute.xlu0 %694
      %vm696 = vcmask 891904
      %v697 = vsel %vm696, %v691, %v693
      %v698 = vsel %vm696, %v693, %v695
      %v700 = vsel %vm245, %v689, 0
      %v703 = vsel %vm249, %v697, 0
      %v706 = vsel %vm249, %v698, 0
      %v709 = vsel %vm249, %v695, 0
      %711 = vmatprep.subr.bf16.mxu0 0
      %712 = vmatpush1.bf16.msra.mxu0 0
      %713 = vmatprep.subr.bf16.mxu0 0
      %714 = vmatpush1.bf16.msra.mxu0 0
      %715 = vmatprep.subr.bf16.mxu0 0
      %716 = vmatpush1.bf16.msra.mxu0 0
      %717 = vmatprep.subr.bf16.mxu0 0
      %718 = vmatpush1.bf16.msra.mxu0 0
      %719 = vmatprep.subr.bf16.mxu0 0
      %720 = vmatpush1.bf16.msra.mxu0 0
      %721 = vmatprep.subr.bf16.mxu0 0
      %722 = vmatpush1.bf16.msra.mxu0 0
      %723 = vmatprep.subr.bf16.mxu0 0
      %724 = vmatpush1.bf16.msra.mxu0 0
      %725 = vmatprep.subr.bf16.mxu0 %v706
      %726 = vmatpush1.bf16.msra.mxu0 %v703
      %727 = vmatprep.subr.bf16.mxu0 0
      %728 = vmatpush2.bf16.msra.mxu0 0
      %729 = vmatprep.subr.bf16.mxu0 0
      %730 = vmatpush2.bf16.msra.mxu0 0
      %731 = vmatprep.subr.bf16.mxu0 0
      %732 = vmatpush2.bf16.msra.mxu0 0
      %733 = vmatprep.subr.bf16.mxu0 0
      %734 = vmatpush2.bf16.msra.mxu0 0
      %735 = vmatprep.subr.bf16.mxu0 0
      %736 = vmatpush2.bf16.msra.mxu0 0
      %737 = vmatprep.subr.bf16.mxu0 0
      %738 = vmatpush2.bf16.msra.mxu0 0
      %739 = vmatprep.subr.bf16.mxu0 0
      %740 = vmatpush2.bf16.msra.mxu0 0
      %741 = vmatprep.subr.bf16.mxu0 0
      %742 = vmatpush2.bf16.msra.mxu0 0
      %743 = vmatprep.mubr.bf16.mxu0 0
      %744 = vmatmul.mubr.bf16.gmra.mxu0 %v700
      %v745 = vpop.f32.mrf.mxu0
      %v746 = vadd.f32 0.0, %v745
      %v747 = vpop.f32.mrf.mxu0
      %v748 = vadd.f32 0.0, %v747
      %v749 = vpop.f32.mrf.mxu0
      %v750 = vadd.f32 0.0, %v749
      %v751 = vpop.f32.mrf.mxu0
      %v752 = vadd.f32 0.0, %v751
      %753 = vdwg.mxu0
      %754 = vmatprep.subr.bf16.mxu0 0
      %755 = vmatpush1.bf16.msra.mxu0 0
      %756 = vmatprep.subr.bf16.mxu0 0
      %757 = vmatpush1.bf16.msra.mxu0 0
      %758 = vmatprep.subr.bf16.mxu0 0
      %759 = vmatpush1.bf16.msra.mxu0 0
      %760 = vmatprep.subr.bf16.mxu0 0
      %761 = vmatpush1.bf16.msra.mxu0 0
      %762 = vmatprep.subr.bf16.mxu0 0
      %763 = vmatpush1.bf16.msra.mxu0 0
      %764 = vmatprep.subr.bf16.mxu0 0
      %765 = vmatpush1.bf16.msra.mxu0 0
      %766 = vmatprep.subr.bf16.mxu0 0
      %767 = vmatpush1.bf16.msra.mxu0 0
      %768 = vmatprep.subr.bf16.mxu0 0
      %769 = vmatpush1.bf16.msra.mxu0 %v709
      %770 = vmatprep.subr.bf16.mxu0 0
      %771 = vmatpush2.bf16.msra.mxu0 0
      %772 = vmatprep.subr.bf16.mxu0 0
      %773 = vmatpush2.bf16.msra.mxu0 0
      %774 = vmatprep.subr.bf16.mxu0 0
      %775 = vmatpush2.bf16.msra.mxu0 0
      %776 = vmatprep.subr.bf16.mxu0 0
      %777 = vmatpush2.bf16.msra.mxu0 0
      %778 = vmatprep.subr.bf16.mxu0 0
      %779 = vmatpush2.bf16.msra.mxu0 0
      %780 = vmatprep.subr.bf16.mxu0 0
      %781 = vmatpush2.bf16.msra.mxu0 0
      %782 = vmatprep.subr.bf16.mxu0 0
      %783 = vmatpush2.bf16.msra.mxu0 0
      %784 = vmatprep.subr.bf16.mxu0 0
      %785 = vmatpush2.bf16.msra.mxu0 0
      %786 = vmatprep.mubr.bf16.mxu0 0
      %787 = vmatmul.mubr.bf16.gmra.mxu0 %v700
      %v788 = vpop.f32.mrf.mxu0
      %v789 = vadd.f32 0.0, %v788
      %v790 = vpop.f32.mrf.mxu0
      %v791 = vpop.f32.mrf.mxu0
      %v792 = vadd.f32 0.0, %v791
      %v793 = vpop.f32.mrf.mxu0
      %794 = vdwg.mxu0
      %v795 = vadd.f32 %v676, %v746
      %v796 = vadd.f32 %v677, %v748
      %v797 = vadd.f32 %v678, %v789
      %v798 = vadd.f32 %v679, %v750
      %v799 = vadd.f32 %v680, %v752
      %v800 = vadd.f32 %v681, %v792
      %s801 = scalar_lea.vmem %s1, 40
      %v802 = vld [vmem:[%s801] sm:$0xf]
      %v803 = vld [vmem:[%s801 + $0x4] sm:$0xf]
      %v806 = vunpack.c.l.b16 %v802
      %v807 = vunpack.c.l.b16 %v803
      %v808 = vpack.c.b16 %v807, %v806
      %809 = vrot.lane.b32.xlu0 %v227, 108
      %v810 = vpop.permute.xlu0 %809
      %811 = vrot.lane.b32.xlu0 %v235, 108
      %v812 = vpop.permute.xlu0 %811
      %813 = vrot.lane.b32.xlu0 %v234, 108
      %v814 = vpop.permute.xlu0 %813
      %vm815 = vcmask 883712
      %v816 = vsel %vm815, %v810, %v812
      %v817 = vsel %vm815, %v812, %v814
      %v819 = vsel %vm245, %v808, 0
      %v822 = vsel %vm249, %v816, 0
      %v825 = vsel %vm249, %v817, 0
      %v828 = vsel %vm249, %v814, 0
      %830 = vmatprep.subr.bf16.mxu0 0
      %831 = vmatpush1.bf16.msra.mxu0 0
      %832 = vmatprep.subr.bf16.mxu0 0
      %833 = vmatpush1.bf16.msra.mxu0 0
      %834 = vmatprep.subr.bf16.mxu0 0
      %835 = vmatpush1.bf16.msra.mxu0 0
      %836 = vmatprep.subr.bf16.mxu0 0
      %837 = vmatpush1.bf16.msra.mxu0 0
      %838 = vmatprep.subr.bf16.mxu0 0
      %839 = vmatpush1.bf16.msra.mxu0 0
      %840 = vmatprep.subr.bf16.mxu0 0
      %841 = vmatpush1.bf16.msra.mxu0 0
      %842 = vmatprep.subr.bf16.mxu0 0
      %843 = vmatpush1.bf16.msra.mxu0 0
      %844 = vmatprep.subr.bf16.mxu0 %v825
      %845 = vmatpush1.bf16.msra.mxu0 %v822
      %846 = vmatprep.subr.bf16.mxu0 0
      %847 = vmatpush2.bf16.msra.mxu0 0
      %848 = vmatprep.subr.bf16.mxu0 0
      %849 = vmatpush2.bf16.msra.mxu0 0
      %850 = vmatprep.subr.bf16.mxu0 0
      %851 = vmatpush2.bf16.msra.mxu0 0
      %852 = vmatprep.subr.bf16.mxu0 0
      %853 = vmatpush2.bf16.msra.mxu0 0
      %854 = vmatprep.subr.bf16.mxu0 0
      %855 = vmatpush2.bf16.msra.mxu0 0
      %856 = vmatprep.subr.bf16.mxu0 0
      %857 = vmatpush2.bf16.msra.mxu0 0
      %858 = vmatprep.subr.bf16.mxu0 0
      %859 = vmatpush2.bf16.msra.mxu0 0
      %860 = vmatprep.subr.bf16.mxu0 0
      %861 = vmatpush2.bf16.msra.mxu0 0
      %862 = vmatprep.mubr.bf16.mxu0 0
      %863 = vmatmul.mubr.bf16.gmra.mxu0 %v819
      %v864 = vpop.f32.mrf.mxu0
      %v865 = vadd.f32 0.0, %v864
      %v866 = vpop.f32.mrf.mxu0
      %v867 = vadd.f32 0.0, %v866
      %v868 = vpop.f32.mrf.mxu0
      %v869 = vadd.f32 0.0, %v868
      %v870 = vpop.f32.mrf.mxu0
      %v871 = vadd.f32 0.0, %v870
      %872 = vdwg.mxu0
      %873 = vmatprep.subr.bf16.mxu0 0
      %874 = vmatpush1.bf16.msra.mxu0 0
      %875 = vmatprep.subr.bf16.mxu0 0
      %876 = vmatpush1.bf16.msra.mxu0 0
      %877 = vmatprep.subr.bf16.mxu0 0
      %878 = vmatpush1.bf16.msra.mxu0 0
      %879 = vmatprep.subr.bf16.mxu0 0
      %880 = vmatpush1.bf16.msra.mxu0 0
      %881 = vmatprep.subr.bf16.mxu0 0
      %882 = vmatpush1.bf16.msra.mxu0 0
      %883 = vmatprep.subr.bf16.mxu0 0
      %884 = vmatpush1.bf16.msra.mxu0 0
      %885 = vmatprep.subr.bf16.mxu0 0
      %886 = vmatpush1.bf16.msra.mxu0 0
      %887 = vmatprep.subr.bf16.mxu0 0
      %888 = vmatpush1.bf16.msra.mxu0 %v828
      %889 = vmatprep.subr.bf16.mxu0 0
      %890 = vmatpush2.bf16.msra.mxu0 0
      %891 = vmatprep.subr.bf16.mxu0 0
      %892 = vmatpush2.bf16.msra.mxu0 0
      %893 = vmatprep.subr.bf16.mxu0 0
      %894 = vmatpush2.bf16.msra.mxu0 0
      %895 = vmatprep.subr.bf16.mxu0 0
      %896 = vmatpush2.bf16.msra.mxu0 0
      %897 = vmatprep.subr.bf16.mxu0 0
      %898 = vmatpush2.bf16.msra.mxu0 0
      %899 = vmatprep.subr.bf16.mxu0 0
      %900 = vmatpush2.bf16.msra.mxu0 0
      %901 = vmatprep.subr.bf16.mxu0 0
      %902 = vmatpush2.bf16.msra.mxu0 0
      %903 = vmatprep.subr.bf16.mxu0 0
      %904 = vmatpush2.bf16.msra.mxu0 0
      %905 = vmatprep.mubr.bf16.mxu0 0
      %906 = vmatmul.mubr.bf16.gmra.mxu0 %v819
      %v907 = vpop.f32.mrf.mxu0
      %v908 = vadd.f32 0.0, %v907
      %v909 = vpop.f32.mrf.mxu0
      %v910 = vpop.f32.mrf.mxu0
      %v911 = vadd.f32 0.0, %v910
      %v912 = vpop.f32.mrf.mxu0
      %913 = vdwg.mxu0
      %v914 = vadd.f32 %v795, %v865
      %v915 = vadd.f32 %v796, %v867
      %v916 = vadd.f32 %v797, %v908
      %v917 = vadd.f32 %v798, %v869
      %v918 = vadd.f32 %v799, %v871
      %v919 = vadd.f32 %v800, %v911
      %s920 = scalar_lea.vmem %s1, 48
      %v921 = vld [vmem:[%s920] sm:$0xf]
      %v922 = vld [vmem:[%s920 + $0x4] sm:$0xf]
      %v925 = vunpack.c.l.b16 %v921
      %v926 = vunpack.c.l.b16 %v922
      %v927 = vpack.c.b16 %v926, %v925
      %928 = vrot.lane.b32.xlu0 %v227, 92
      %v929 = vpop.permute.xlu0 %928
      %930 = vrot.lane.b32.xlu0 %v235, 92
      %v931 = vpop.permute.xlu0 %930
      %932 = vrot.lane.b32.xlu0 %v234, 92
      %v933 = vpop.permute.xlu0 %932
      %vm934 = vcmask 752640
      %v935 = vsel %vm934, %v929, %v931
      %v936 = vsel %vm934, %v931, %v933
      %v938 = vsel %vm245, %v927, 0
      %v941 = vsel %vm249, %v935, 0
      %v944 = vsel %vm249, %v936, 0
      %v947 = vsel %vm249, %v933, 0
      %949 = vmatprep.subr.bf16.mxu0 0
      %950 = vmatpush1.bf16.msra.mxu0 0
      %951 = vmatprep.subr.bf16.mxu0 0
      %952 = vmatpush1.bf16.msra.mxu0 0
      %953 = vmatprep.subr.bf16.mxu0 0
      %954 = vmatpush1.bf16.msra.mxu0 0
      %955 = vmatprep.subr.bf16.mxu0 0
      %956 = vmatpush1.bf16.msra.mxu0 0
      %957 = vmatprep.subr.bf16.mxu0 0
      %958 = vmatpush1.bf16.msra.mxu0 0
      %959 = vmatprep.subr.bf16.mxu0 0
      %960 = vmatpush1.bf16.msra.mxu0 0
      %961 = vmatprep.subr.bf16.mxu0 0
      %962 = vmatpush1.bf16.msra.mxu0 0
      %963 = vmatprep.subr.bf16.mxu0 %v944
      %964 = vmatpush1.bf16.msra.mxu0 %v941
      %965 = vmatprep.subr.bf16.mxu0 0
      %966 = vmatpush2.bf16.msra.mxu0 0
      %967 = vmatprep.subr.bf16.mxu0 0
      %968 = vmatpush2.bf16.msra.mxu0 0
      %969 = vmatprep.subr.bf16.mxu0 0
      %970 = vmatpush2.bf16.msra.mxu0 0
      %971 = vmatprep.subr.bf16.mxu0 0
      %972 = vmatpush2.bf16.msra.mxu0 0
      %973 = vmatprep.subr.bf16.mxu0 0
      %974 = vmatpush2.bf16.msra.mxu0 0
      %975 = vmatprep.subr.bf16.mxu0 0
      %976 = vmatpush2.bf16.msra.mxu0 0
      %977 = vmatprep.subr.bf16.mxu0 0
      %978 = vmatpush2.bf16.msra.mxu0 0
      %979 = vmatprep.subr.bf16.mxu0 0
      %980 = vmatpush2.bf16.msra.mxu0 0
      %981 = vmatprep.mubr.bf16.mxu0 0
      %982 = vmatmul.mubr.bf16.gmra.mxu0 %v938
      %v983 = vpop.f32.mrf.mxu0
      %v984 = vadd.f32 0.0, %v983
      %v985 = vpop.f32.mrf.mxu0
      %v986 = vadd.f32 0.0, %v985
      %v987 = vpop.f32.mrf.mxu0
      %v988 = vadd.f32 0.0, %v987
      %v989 = vpop.f32.mrf.mxu0
      %v990 = vadd.f32 0.0, %v989
      %991 = vdwg.mxu0
      %992 = vmatprep.subr.bf16.mxu0 0
      %993 = vmatpush1.bf16.msra.mxu0 0
      %994 = vmatprep.subr.bf16.mxu0 0
      %995 = vmatpush1.bf16.msra.mxu0 0
      %996 = vmatprep.subr.bf16.mxu0 0
      %997 = vmatpush1.bf16.msra.mxu0 0
      %998 = vmatprep.subr.bf16.mxu0 0
      %999 = vmatpush1.bf16.msra.mxu0 0
      %1000 = vmatprep.subr.bf16.mxu0 0
      %1001 = vmatpush1.bf16.msra.mxu0 0
      %1002 = vmatprep.subr.bf16.mxu0 0
      %1003 = vmatpush1.bf16.msra.mxu0 0
      %1004 = vmatprep.subr.bf16.mxu0 0
      %1005 = vmatpush1.bf16.msra.mxu0 0
      %1006 = vmatprep.subr.bf16.mxu0 0
      %1007 = vmatpush1.bf16.msra.mxu0 %v947
      %1008 = vmatprep.subr.bf16.mxu0 0
      %1009 = vmatpush2.bf16.msra.mxu0 0
      %1010 = vmatprep.subr.bf16.mxu0 0
      %1011 = vmatpush2.bf16.msra.mxu0 0
      %1012 = vmatprep.subr.bf16.mxu0 0
      %1013 = vmatpush2.bf16.msra.mxu0 0
      %1014 = vmatprep.subr.bf16.mxu0 0
      %1015 = vmatpush2.bf16.msra.mxu0 0
      %1016 = vmatprep.subr.bf16.mxu0 0
      %1017 = vmatpush2.bf16.msra.mxu0 0
      %1018 = vmatprep.subr.bf16.mxu0 0
      %1019 = vmatpush2.bf16.msra.mxu0 0
      %1020 = vmatprep.subr.bf16.mxu0 0
      %1021 = vmatpush2.bf16.msra.mxu0 0
      %1022 = vmatprep.subr.bf16.mxu0 0
      %1023 = vmatpush2.bf16.msra.mxu0 0
      %1024 = vmatprep.mubr.bf16.mxu0 0
      %1025 = vmatmul.mubr.bf16.gmra.mxu0 %v938
      %v1026 = vpop.f32.mrf.mxu0
      %v1027 = vadd.f32 0.0, %v1026
      %v1028 = vpop.f32.mrf.mxu0
      %v1029 = vpop.f32.mrf.mxu0
      %v1030 = vadd.f32 0.0, %v1029
      %v1031 = vpop.f32.mrf.mxu0
      %1032 = vdwg.mxu0
      %v1033 = vadd.f32 %v914, %v984
      %v1034 = vadd.f32 %v915, %v986
      %v1035 = vadd.f32 %v916, %v1027
      %v1036 = vadd.f32 %v917, %v988
      %v1037 = vadd.f32 %v918, %v990
      %v1038 = vadd.f32 %v919, %v1030
      %s1039 = scalar_lea.vmem %s1, 56
      %v1040 = vld [vmem:[%s1039] sm:$0xf]
      %v1041 = vld [vmem:[%s1039 + $0x4] sm:$0xf]
      %v1044 = vunpack.c.l.b16 %v1040
      %v1045 = vunpack.c.l.b16 %v1041
      %v1046 = vpack.c.b16 %v1045, %v1044
      %1047 = vrot.lane.b32.xlu0 %v227, 91
      %v1048 = vpop.permute.xlu0 %1047
      %1049 = vrot.lane.b32.xlu0 %v235, 91
      %v1050 = vpop.permute.xlu0 %1049
      %1051 = vrot.lane.b32.xlu0 %v234, 91
      %v1052 = vpop.permute.xlu0 %1051
      %vm1053 = vcmask 744448
      %v1054 = vsel %vm1053, %v1048, %v1050
      %v1055 = vsel %vm1053, %v1050, %v1052
      %v1057 = vsel %vm245, %v1046, 0
      %v1060 = vsel %vm249, %v1054, 0
      %v1063 = vsel %vm249, %v1055, 0
      %v1066 = vsel %vm249, %v1052, 0
      %1068 = vmatprep.subr.bf16.mxu0 0
      %1069 = vmatpush1.bf16.msra.mxu0 0
      %1070 = vmatprep.subr.bf16.mxu0 0
      %1071 = vmatpush1.bf16.msra.mxu0 0
      %1072 = vmatprep.subr.bf16.mxu0 0
      %1073 = vmatpush1.bf16.msra.mxu0 0
      %1074 = vmatprep.subr.bf16.mxu0 0
      %1075 = vmatpush1.bf16.msra.mxu0 0
      %1076 = vmatprep.subr.bf16.mxu0 0
      %1077 = vmatpush1.bf16.msra.mxu0 0
      %1078 = vmatprep.subr.bf16.mxu0 0
      %1079 = vmatpush1.bf16.msra.mxu0 0
      %1080 = vmatprep.subr.bf16.mxu0 0
      %1081 = vmatpush1.bf16.msra.mxu0 0
      %1082 = vmatprep.subr.bf16.mxu0 %v1063
      %1083 = vmatpush1.bf16.msra.mxu0 %v1060
      %1084 = vmatprep.subr.bf16.mxu0 0
      %1085 = vmatpush2.bf16.msra.mxu0 0
      %1086 = vmatprep.subr.bf16.mxu0 0
      %1087 = vmatpush2.bf16.msra.mxu0 0
      %1088 = vmatprep.subr.bf16.mxu0 0
      %1089 = vmatpush2.bf16.msra.mxu0 0
      %1090 = vmatprep.subr.bf16.mxu0 0
      %1091 = vmatpush2.bf16.msra.mxu0 0
      %1092 = vmatprep.subr.bf16.mxu0 0
      %1093 = vmatpush2.bf16.msra.mxu0 0
      %1094 = vmatprep.subr.bf16.mxu0 0
      %1095 = vmatpush2.bf16.msra.mxu0 0
      %1096 = vmatprep.subr.bf16.mxu0 0
      %1097 = vmatpush2.bf16.msra.mxu0 0
      %1098 = vmatprep.subr.bf16.mxu0 0
      %1099 = vmatpush2.bf16.msra.mxu0 0
      %1100 = vmatprep.mubr.bf16.mxu0 0
      %1101 = vmatmul.mubr.bf16.gmra.mxu0 %v1057
      %v1102 = vpop.f32.mrf.mxu0
      %v1103 = vadd.f32 0.0, %v1102
      %v1104 = vpop.f32.mrf.mxu0
      %v1105 = vadd.f32 0.0, %v1104
      %v1106 = vpop.f32.mrf.mxu0
      %v1107 = vadd.f32 0.0, %v1106
      %v1108 = vpop.f32.mrf.mxu0
      %v1109 = vadd.f32 0.0, %v1108
      %1110 = vdwg.mxu0
      %1111 = vmatprep.subr.bf16.mxu0 0
      %1112 = vmatpush1.bf16.msra.mxu0 0
      %1113 = vmatprep.subr.bf16.mxu0 0
      %1114 = vmatpush1.bf16.msra.mxu0 0
      %1115 = vmatprep.subr.bf16.mxu0 0
      %1116 = vmatpush1.bf16.msra.mxu0 0
      %1117 = vmatprep.subr.bf16.mxu0 0
      %1118 = vmatpush1.bf16.msra.mxu0 0
      %1119 = vmatprep.subr.bf16.mxu0 0
      %1120 = vmatpush1.bf16.msra.mxu0 0
      %1121 = vmatprep.subr.bf16.mxu0 0
      %1122 = vmatpush1.bf16.msra.mxu0 0
      %1123 = vmatprep.subr.bf16.mxu0 0
      %1124 = vmatpush1.bf16.msra.mxu0 0
      %1125 = vmatprep.subr.bf16.mxu0 0
      %1126 = vmatpush1.bf16.msra.mxu0 %v1066
      %1127 = vmatprep.subr.bf16.mxu0 0
      %1128 = vmatpush2.bf16.msra.mxu0 0
      %1129 = vmatprep.subr.bf16.mxu0 0
      %1130 = vmatpush2.bf16.msra.mxu0 0
      %1131 = vmatprep.subr.bf16.mxu0 0
      %1132 = vmatpush2.bf16.msra.mxu0 0
      %1133 = vmatprep.subr.bf16.mxu0 0
      %1134 = vmatpush2.bf16.msra.mxu0 0
      %1135 = vmatprep.subr.bf16.mxu0 0
      %1136 = vmatpush2.bf16.msra.mxu0 0
      %1137 = vmatprep.subr.bf16.mxu0 0
      %1138 = vmatpush2.bf16.msra.mxu0 0
      %1139 = vmatprep.subr.bf16.mxu0 0
      %1140 = vmatpush2.bf16.msra.mxu0 0
      %1141 = vmatprep.subr.bf16.mxu0 0
      %1142 = vmatpush2.bf16.msra.mxu0 0
      %1143 = vmatprep.mubr.bf16.mxu0 0
      %1144 = vmatmul.mubr.bf16.gmra.mxu0 %v1057
      %v1145 = vpop.f32.mrf.mxu0
      %v1146 = vadd.f32 0.0, %v1145
      %v1147 = vpop.f32.mrf.mxu0
      %v1148 = vpop.f32.mrf.mxu0
      %v1149 = vadd.f32 0.0, %v1148
      %v1150 = vpop.f32.mrf.mxu0
      %1151 = vdwg.mxu0
      %v1152 = vadd.f32 %v1033, %v1103
      %v1153 = vadd.f32 %v1034, %v1105
      %v1154 = vadd.f32 %v1035, %v1146
      %v1155 = vadd.f32 %v1036, %v1107
      %v1156 = vadd.f32 %v1037, %v1109
      %v1157 = vadd.f32 %v1038, %v1149
      %s1158 = scalar_lea.vmem %s1, 64
      %v1159 = vld [vmem:[%s1158] sm:$0xf]
      %v1160 = vld [vmem:[%s1158 + $0x4] sm:$0xf]
      %v1163 = vunpack.c.l.b16 %v1159
      %v1164 = vunpack.c.l.b16 %v1160
      %v1165 = vpack.c.b16 %v1164, %v1163
      %1166 = vrot.lane.b32.xlu0 %v227, 90
      %v1167 = vpop.permute.xlu0 %1166
      %1168 = vrot.lane.b32.xlu0 %v235, 90
      %v1169 = vpop.permute.xlu0 %1168
      %1170 = vrot.lane.b32.xlu0 %v234, 90
      %v1171 = vpop.permute.xlu0 %1170
      %vm1172 = vcmask 736256
      %v1173 = vsel %vm1172, %v1167, %v1169
      %v1174 = vsel %vm1172, %v1169, %v1171
      %v1176 = vsel %vm245, %v1165, 0
      %v1179 = vsel %vm249, %v1173, 0
      %v1182 = vsel %vm249, %v1174, 0
      %v1185 = vsel %vm249, %v1171, 0
      %1187 = vmatprep.subr.bf16.mxu0 0
      %1188 = vmatpush1.bf16.msra.mxu0 0
      %1189 = vmatprep.subr.bf16.mxu0 0
      %1190 = vmatpush1.bf16.msra.mxu0 0
      %1191 = vmatprep.subr.bf16.mxu0 0
      %1192 = vmatpush1.bf16.msra.mxu0 0
      %1193 = vmatprep.subr.bf16.mxu0 0
      %1194 = vmatpush1.bf16.msra.mxu0 0
      %1195 = vmatprep.subr.bf16.mxu0 0
      %1196 = vmatpush1.bf16.msra.mxu0 0
      %1197 = vmatprep.subr.bf16.mxu0 0
      %1198 = vmatpush1.bf16.msra.mxu0 0
      %1199 = vmatprep.subr.bf16.mxu0 0
      %1200 = vmatpush1.bf16.msra.mxu0 0
      %1201 = vmatprep.subr.bf16.mxu0 %v1182
      %1202 = vmatpush1.bf16.msra.mxu0 %v1179
      %1203 = vmatprep.subr.bf16.mxu0 0
      %1204 = vmatpush2.bf16.msra.mxu0 0
      %1205 = vmatprep.subr.bf16.mxu0 0
      %1206 = vmatpush2.bf16.msra.mxu0 0
      %1207 = vmatprep.subr.bf16.mxu0 0
      %1208 = vmatpush2.bf16.msra.mxu0 0
      %1209 = vmatprep.subr.bf16.mxu0 0
      %1210 = vmatpush2.bf16.msra.mxu0 0
      %1211 = vmatprep.subr.bf16.mxu0 0
      %1212 = vmatpush2.bf16.msra.mxu0 0
      %1213 = vmatprep.subr.bf16.mxu0 0
      %1214 = vmatpush2.bf16.msra.mxu0 0
      %1215 = vmatprep.subr.bf16.mxu0 0
      %1216 = vmatpush2.bf16.msra.mxu0 0
      %1217 = vmatprep.subr.bf16.mxu0 0
      %1218 = vmatpush2.bf16.msra.mxu0 0
      %1219 = vmatprep.mubr.bf16.mxu0 0
      %1220 = vmatmul.mubr.bf16.gmra.mxu0 %v1176
      %v1221 = vpop.f32.mrf.mxu0
      %v1222 = vadd.f32 0.0, %v1221
      %v1223 = vpop.f32.mrf.mxu0
      %v1224 = vadd.f32 0.0, %v1223
      %v1225 = vpop.f32.mrf.mxu0
      %v1226 = vadd.f32 0.0, %v1225
      %v1227 = vpop.f32.mrf.mxu0
      %v1228 = vadd.f32 0.0, %v1227
      %1229 = vdwg.mxu0
      %1230 = vmatprep.subr.bf16.mxu0 0
      %1231 = vmatpush1.bf16.msra.mxu0 0
      %1232 = vmatprep.subr.bf16.mxu0 0
      %1233 = vmatpush1.bf16.msra.mxu0 0
      %1234 = vmatprep.subr.bf16.mxu0 0
      %1235 = vmatpush1.bf16.msra.mxu0 0
      %1236 = vmatprep.subr.bf16.mxu0 0
      %1237 = vmatpush1.bf16.msra.mxu0 0
      %1238 = vmatprep.subr.bf16.mxu0 0
      %1239 = vmatpush1.bf16.msra.mxu0 0
      %1240 = vmatprep.subr.bf16.mxu0 0
      %1241 = vmatpush1.bf16.msra.mxu0 0
      %1242 = vmatprep.subr.bf16.mxu0 0
      %1243 = vmatpush1.bf16.msra.mxu0 0
      %1244 = vmatprep.subr.bf16.mxu0 0
      %1245 = vmatpush1.bf16.msra.mxu0 %v1185
      %1246 = vmatprep.subr.bf16.mxu0 0
      %1247 = vmatpush2.bf16.msra.mxu0 0
      %1248 = vmatprep.subr.bf16.mxu0 0
      %1249 = vmatpush2.bf16.msra.mxu0 0
      %1250 = vmatprep.subr.bf16.mxu0 0
      %1251 = vmatpush2.bf16.msra.mxu0 0
      %1252 = vmatprep.subr.bf16.mxu0 0
      %1253 = vmatpush2.bf16.msra.mxu0 0
      %1254 = vmatprep.subr.bf16.mxu0 0
      %1255 = vmatpush2.bf16.msra.mxu0 0
      %1256 = vmatprep.subr.bf16.mxu0 0
      %1257 = vmatpush2.bf16.msra.mxu0 0
      %1258 = vmatprep.subr.bf16.mxu0 0
      %1259 = vmatpush2.bf16.msra.mxu0 0
      %1260 = vmatprep.subr.bf16.mxu0 0
      %1261 = vmatpush2.bf16.msra.mxu0 0
      %1262 = vmatprep.mubr.bf16.mxu0 0
      %1263 = vmatmul.mubr.bf16.gmra.mxu0 %v1176
      %v1264 = vpop.f32.mrf.mxu0
      %v1265 = vadd.f32 0.0, %v1264
      %v1266 = vpop.f32.mrf.mxu0
      %v1267 = vpop.f32.mrf.mxu0
      %v1268 = vadd.f32 0.0, %v1267
      %v1269 = vpop.f32.mrf.mxu0
      %1270 = vdwg.mxu0
      %v1271 = vadd.f32 %v1152, %v1222
      %v1272 = vadd.f32 %v1153, %v1224
      %v1273 = vadd.f32 %v1154, %v1265
      %v1274 = vadd.f32 %v1155, %v1226
      %v1275 = vadd.f32 %v1156, %v1228
      %v1276 = vadd.f32 %v1157, %v1268
      %v1277 = vld [vmem:[%s2] sm:$0xff]
      %1279 = vset.pattern.permute.xlu0 0
      %1280 = vperm.xlu0 %1279, %v1277
      %v1281 = vpop.permute.xlu0 %1280
      %v1283 = vadd.f32 %v1271, %v1281
      %v1284 = vadd.f32 %v1272, %v1281
      %v1285 = vadd.f32 %v1273, %v1281
      %v1286 = vxor.u32 %v1274, 2147483648
      %v1287 = vxor.u32 %v1275, 2147483648
      %v1288 = vxor.u32 %v1276, 2147483648
      %v1289 = vmul.f32 %v1286, 1.442695
      %v1290 = vpow.pop %v1289
      %v1291 = vmul.f32 %v1287, 1.442695
      %v1292 = vpow.pop %v1291
      %v1293 = vmul.f32 %v1288, 1.442695
      %v1294 = vpow.pop %v1293
      %v1295 = vadd.f32 %v1290, 1.0
      %v1296 = vadd.f32 %v1292, 1.0
      %v1297 = vadd.f32 %v1294, 1.0
      %v1298 = vrcp.pop %v1295
      %v1299 = vmul.f32 1.0, %v1298
      %v1300 = vrcp.pop %v1296
      %v1301 = vmul.f32 1.0, %v1300
      %v1302 = vrcp.pop %v1297
      %v1303 = vmul.f32 1.0, %v1302
      %v1304 = vmul.f32 %v1283, %v1299
      %v1305 = vmul.f32 %v1284, %v1301
      %v1306 = vmul.f32 %v1285, %v1303
      %1307 = vst [vmem:[%s206] sm:$0xff] %v1304
      %1308 = vst [vmem:[%s206 + $0x8] sm:$0xff] %v1305
      %vm1309 = vcmask 261120
      %1310 = vst.msk [vmem:[%s206 + $0x10] sm:$0xff] %vm1309, %v1306
      %p1311 = scmp.lt.s32.totalorder %s18, 1
      %s1312 = scalar_select %p1311, %s18, 1
      %p1313 = scmp.lt.s32.totalorder %s19, 0
      %s1314 = scalar_select %p1313, %s19, 0
      %s1315 = smul.addr %s1314, 3
      %s1316 = smul.addr %s1312, 3
      %s1317 = sadd.s32 %s1315, %s1316
      %s1318 = smul.addr %s1317, 8
      %s1319 = scalar_lea.vmem %s3, %s1318
      // Predicated region
      $region33: #{self_attention_block.1} parent=31 // pred_check
        %p1320 = pneg %p116
      $region34: #{self_attention_block.1} parent=31 // pred_check_branch
        %1322 = sbr.rel (%p1320) target = $region36
      $region35: #{self_attention_block.1} parent=31 // pred_region
        _
      $region36: #{self_attention_block.1} parent=31 // pred_fallthru
        _
    $region32: #{self_attention_block.1} parent=5 // pred_fallthru
      _
    %p1323 = scmp.le.s32.totalorder 2, %s9
    // Predicated region
    $region37: #{self_attention_block.1} parent=5 // pred_check
      %p1324 = pneg %p1323
    $region38: #{self_attention_block.1} parent=5 // pred_check_branch
      %1326 = sbr.rel (%p1324) target = $region40
    $region39: #{self_attention_block.1} parent=5 // pred_region
      %s1327 = ssub.s32 %s9, 2
      // Predicated region
      $region41: #{self_attention_block.1} parent=39 // pred_check
        %p1328 = pneg %p122
      $region42: #{self_attention_block.1} parent=39 // pred_check_branch
        %1330 = sbr.rel (%p1328) target = $region44
      $region43: #{self_attention_block.1} parent=39 // pred_region
        %p1331 = scmp.lt.s32.totalorder %s20, 1
        %s1332 = scalar_select %p1331, %s20, 1
        %p1333 = scmp.lt.s32.totalorder %s21, 0
        %s1334 = scalar_select %p1333, %s21, 0
        %s1335 = smul.addr %s1334, 3
        %s1336 = smul.addr %s1332, 3
        %s1337 = sadd.s32 %s1335, %s1336
        %s1338 = smul.addr %s1337, 8
        %s1339 = scalar_lea.vmem %s3, %s1338
      $region44: #{self_attention_block.1} parent=39 // pred_fallthru
        _
    $region40: #{self_attention_block.1} parent=5 // pred_fallthru
      _
  $region6: #{self_attention_block.1} parent=0 // loop_footer
    %s13 = sadd.s32 1, %s9
  $region7: #{self_attention_block.1} parent=0 // loop_footer_branch
    %8 = sbr.rel target = $region3
  $region8: #{self_attention_block.1} parent=0 // loop_exit
    _

</llo_original>
